<compile_context>
chip_gen: v7x
topology: tpu7x:2x2x1
jax: 0.10.0
libtpu: 0.0.40
codegen_flags: <defaults>
</compile_context>

<pallas_src>
import functools

import jax
import jax.numpy as jnp
from jax import lax
from jax.experimental import pallas as pl
from jax.experimental.pallas import tpu as pltpu


def _round_up(x, m):
    return (x + m - 1) // m * m


def ncf_fused_kernel(uid_ref, iid_ref, tab_ref, w1_ref, b1_ref, w2_ref,
                     b2_ref, w3_ref, b3_ref, o_ref, *, nu_pad):
    # uid, iid : (1, tm)  int32   streamed id lane-vectors for this batch tile
    # tab      : (F, NP)  bf16    resident packed [user ‖ item] table (transposed)
    # w1       : (H1, F)  bf16    resident (concat already fused into packing)
    # b1       : (H1, 1)  f32     resident
    # w2       : (H2, H1) bf16    resident
    # b2       : (H2, 1)  f32     resident
    # w3       : (1, H2)  bf16    resident
    # b3       : (1, 1)   f32     SMEM scalar
    # o        : (1, tm)  f32     lane-dense batch row
    n_rows = tab_ref.shape[1]                      # NP = NU_pad + NI_pad
    tm = uid_ref.shape[1]

    # --- fused embedding gather + concat: one-hot MXU matmul -----------------
    row = lax.broadcasted_iota(jnp.int32, (n_rows, tm), 0)
    hit = jnp.logical_or(row == uid_ref[...], row == iid_ref[...] + nu_pad)
    onehot = jnp.where(hit, 1.0, 0.0).astype(jnp.bfloat16)            # (NP, tm)
    x_t = jnp.dot(tab_ref[...], onehot,
                  preferred_element_type=jnp.float32).astype(jnp.bfloat16)  # (F, tm)

    # --- 3-layer MLP, batch on the lane axis (no in-kernel transposes) -------
    h1 = jnp.dot(w1_ref[...], x_t, preferred_element_type=jnp.float32)
    h1 = jnp.maximum(h1 + b1_ref[...], 0.0)                           # (H1, tm) f32
    h2 = jnp.dot(w2_ref[...], h1.astype(jnp.bfloat16),
                 preferred_element_type=jnp.float32)
    h2 = jnp.maximum(h2 + b2_ref[...], 0.0)                           # (H2, tm) f32
    out = jnp.dot(w3_ref[...], h2.astype(jnp.bfloat16),
                  preferred_element_type=jnp.float32)                 # (1, tm)  f32
    o_ref[...] = out + b3_ref[0, 0]


class NCFParams:
    """float32 parameters mirroring the PyTorch module (Embedding + 3 Linear)."""

    def __init__(self, num_users, num_items, embedding_dim=50,
                 hidden_dims=(128, 64), key=None):
        key = jax.random.PRNGKey(0) if key is None else key
        ks = jax.random.split(key, 2 + 2 * (len(hidden_dims) + 1))
        self.user_embedding = jax.random.normal(
            ks[0], (num_users, embedding_dim), jnp.float32) * 0.1
        self.item_embedding = jax.random.normal(
            ks[1], (num_items, embedding_dim), jnp.float32) * 0.1
        dims = [2 * embedding_dim] + list(hidden_dims) + [1]
        self.weights, self.biases = [], []
        ki = 2
        for d_in, d_out in zip(dims[:-1], dims[1:]):
            w = jax.random.normal(ks[ki], (d_in, d_out), jnp.float32) / jnp.sqrt(d_in)
            b = jax.random.normal(ks[ki + 1], (1, d_out), jnp.float32) * 0.01
            self.weights.append(w)
            self.biases.append(b)
            ki += 2


def pack_ncf_params(params: NCFParams):
    """One-time bf16 packing/casting of parameters for the fused kernel."""
    ue, ie = params.user_embedding, params.item_embedding
    (nu, e), (ni, _) = ue.shape, ie.shape
    w1, w2, w3 = params.weights
    b1, b2, b3 = params.biases
    h1, h2 = w1.shape[1], w2.shape[1]

    f = _round_up(2 * e, 128)          # packed feature width: [u | v | zero-pad]
    nu_pad = _round_up(nu, 128)
    ni_pad = _round_up(ni, 128)

    # Block-diagonal packed table: user rows fill cols [0, e), item rows fill
    # cols [e, 2e).  (Kept small enough to be VMEM-resident — see TODO above.)
    tab = jnp.zeros((nu_pad + ni_pad, f), jnp.float32)
    tab = tab.at[:nu, :e].set(ue)
    tab = tab.at[nu_pad:nu_pad + ni, e:2 * e].set(ie)
    w1p = jnp.zeros((f, h1), jnp.float32).at[:2 * e, :].set(w1)

    return dict(
        nu_pad=nu_pad,
        tab_t=tab.T.astype(jnp.bfloat16),     # (F, NP)   VMEM-resident
        w1_t=w1p.T.astype(jnp.bfloat16),      # (H1, F)
        b1_c=b1.reshape(h1, 1),               # (H1, 1)   f32
        w2_t=w2.T.astype(jnp.bfloat16),       # (H2, H1)
        b2_c=b2.reshape(h2, 1),               # (H2, 1)   f32
        w3_t=w3.T.astype(jnp.bfloat16),       # (1, H2)
        b3_s=b3.reshape(1, 1),                # (1, 1)    f32 -> SMEM
    )


def ncf_forward(packed, user_ids, item_ids, *, block_b=1024):
    """Fused NCF forward. Returns [B] f32 scores (== torch `output.squeeze()`)."""
    B = user_ids.shape[0]

    # Batch tiling: lane-aligned tiles; force >= 2 grid steps when possible so
    # the "parallel" batch axis can shard across both v7x TensorCores.
    # (block_b ~512 is a better default on v5e; 1024-2048 on v6e/v7x.)
    Bp = _round_up(B, 128)
    tm = min(_round_up(block_b, 128), Bp)
    if tm == Bp and Bp > 128:
        tm = _round_up(Bp // 2, 128)
    Bp = _round_up(Bp, tm)

    pad = Bp - B
    uid = jnp.pad(user_ids.astype(jnp.int32), (0, pad)).reshape(1, Bp)
    iid = jnp.pad(item_ids.astype(jnp.int32), (0, pad)).reshape(1, Bp)

    # Constant index_map -> weights/table stay VMEM-resident for the whole grid.
    # (pl.Buffered(1) single-buffering of these ~100 KB is possible but not needed.)
    resident = lambda a: pl.BlockSpec(a.shape, lambda i: (0, 0))

    kernel = functools.partial(ncf_fused_kernel, nu_pad=packed["nu_pad"])
    out = pl.pallas_call(
        kernel,
        out_shape=jax.ShapeDtypeStruct((1, Bp), jnp.float32),
        grid=(Bp // tm,),
        in_specs=[
            pl.BlockSpec((1, tm), lambda i: (0, i)),            # user ids (streamed)
            pl.BlockSpec((1, tm), lambda i: (0, i)),            # item ids (streamed)
            resident(packed["tab_t"]),
            resident(packed["w1_t"]),
            resident(packed["b1_c"]),
            resident(packed["w2_t"]),
            resident(packed["b2_c"]),
            resident(packed["w3_t"]),
            pl.BlockSpec(memory_space=pltpu.MemorySpace.SMEM),  # b3 scalar
        ],
        out_specs=pl.BlockSpec((1, tm), lambda i: (0, i)),      # lane-dense output
        compiler_params=pltpu.CompilerParams(
            dimension_semantics=("parallel",)),
    )(uid, iid, packed["tab_t"], packed["w1_t"], packed["b1_c"],
      packed["w2_t"], packed["b2_c"], packed["w3_t"], packed["b3_s"])
    return out[0, :B]


if __name__ == "__main__":
    num_users, num_items = 100, 200
    batch = 8

    params = NCFParams(num_users, num_items, embedding_dim=50,
                       hidden_dims=(128, 64), key=jax.random.PRNGKey(0))
    packed = pack_ncf_params(params)

    k_u, k_i = jax.random.split(jax.random.PRNGKey(0))
    user_ids = jax.random.randint(k_u, (batch,), 0, num_users, dtype=jnp.int32)
    item_ids = jax.random.randint(k_i, (batch,), 0, num_items, dtype=jnp.int32)

    out = jax.block_until_ready(ncf_forward(packed, user_ids, item_ids))
    assert out.shape == (batch,)

    w1, w2, w3 = params.weights
    b1, b2, b3 = params.biases
    u_f32 = params.user_embedding[user_ids]
    v_f32 = params.item_embedding[item_ids]

    # (1) Pure-f32 module semantics (loose tol — kernel uses bf16 table/weights).
    x = jnp.concatenate([u_f32, v_f32], axis=1)
    h = jnp.maximum(x @ w1 + b1, 0.0)
    h = jnp.maximum(h @ w2 + b2, 0.0)
    ref_f32 = jnp.squeeze(h @ w3 + b3)
    assert jnp.allclose(out, ref_f32, atol=3e-2), jnp.abs(out - ref_f32).max()

    # (2) Reference mimicking the kernel's bf16 quantization (tight tol).
    bq = lambda a: a.astype(jnp.bfloat16)
    xq = jnp.concatenate([bq(u_f32), bq(v_f32)], axis=1)
    h1r = jnp.maximum(jnp.dot(xq, bq(w1), preferred_element_type=jnp.float32) + b1, 0.0)
    h2r = jnp.maximum(jnp.dot(bq(h1r), bq(w2), preferred_element_type=jnp.float32) + b2, 0.0)
    ref_bf16 = jnp.squeeze(
        jnp.dot(bq(h2r), bq(w3), preferred_element_type=jnp.float32) + b3)
    assert jnp.allclose(out, ref_bf16, atol=3e-3, rtol=3e-3), jnp.abs(out - ref_bf16).max()

    print("KERNEL_OK")
</pallas_src>

<mosaic_0001>
module attributes {stable_mosaic.version = 11 : i64} {
  func.func @ncf_fused_kernel(%arg0: i32, %arg1: memref<1x128xi32, #tpu.memory_space<vmem>>, %arg2: memref<1x128xi32, #tpu.memory_space<vmem>>, %arg3: memref<128x384xbf16, #tpu.memory_space<vmem>>, %arg4: memref<128x128xbf16, #tpu.memory_space<vmem>>, %arg5: memref<128x1xf32, #tpu.memory_space<vmem>>, %arg6: memref<64x128xbf16, #tpu.memory_space<vmem>>, %arg7: memref<64x1xf32, #tpu.memory_space<vmem>>, %arg8: memref<1x64xbf16, #tpu.memory_space<vmem>>, %arg9: memref<1x1xf32, #tpu.memory_space<smem>>, %arg10: memref<1x128xf32, #tpu.memory_space<vmem>>) attributes {dimension_semantics = [#tpu.dimension_semantics<parallel>], iteration_bounds = array<i64: 1>, scalar_prefetch = 0 : i64, scratch_operands = 0 : i64, tpu.core_type = #tpu.core_type<tc>, window_params = [{transform_indices = @transform_0, window_bounds = array<i64: 1, 128>}, {transform_indices = @transform_1, window_bounds = array<i64: 1, 128>}, {pipeline_mode = #tpu.pipeline_mode<synchronous>, transform_indices = @transform_2, window_bounds = array<i64: 128, 384>}, {pipeline_mode = #tpu.pipeline_mode<synchronous>, transform_indices = @transform_3, window_bounds = array<i64: 128, 128>}, {pipeline_mode = #tpu.pipeline_mode<synchronous>, transform_indices = @transform_4, window_bounds = array<i64: 128, 1>}, {pipeline_mode = #tpu.pipeline_mode<synchronous>, transform_indices = @transform_5, window_bounds = array<i64: 64, 128>}, {pipeline_mode = #tpu.pipeline_mode<synchronous>, transform_indices = @transform_6, window_bounds = array<i64: 64, 1>}, {pipeline_mode = #tpu.pipeline_mode<synchronous>, transform_indices = @transform_7, window_bounds = array<i64: 1, 64>}, {transform_indices = @transform_8, window_bounds = array<i64: 1, 1>}, {transform_indices = @transform_9, window_bounds = array<i64: 1, 128>}]} {
    %0 = tpu.iota {dimensions = array<i32: 0>} : vector<384x128xi32>
    %c0 = arith.constant 0 : index
    %c0_0 = arith.constant 0 : index
    %1 = vector.load %arg1[%c0, %c0_0] : memref<1x128xi32, #tpu.memory_space<vmem>>, vector<1x128xi32>
    %2 = vector.broadcast %1 : vector<1x128xi32> to vector<384x128xi32>
    %3 = arith.cmpi eq, %0, %2 : vector<384x128xi32>
    %c0_1 = arith.constant 0 : index
    %c0_2 = arith.constant 0 : index
    %4 = vector.load %arg2[%c0_1, %c0_2] : memref<1x128xi32, #tpu.memory_space<vmem>>, vector<1x128xi32>
    %c128_i32 = arith.constant 128 : i32
    %5 = vector.broadcast %c128_i32 : i32 to vector<1x128xi32>
    %6 = arith.addi %4, %5 : vector<1x128xi32>
    %7 = vector.broadcast %6 : vector<1x128xi32> to vector<384x128xi32>
    %8 = arith.cmpi eq, %0, %7 : vector<384x128xi32>
    %9 = arith.ori %3, %8 : vector<384x128xi1>
    %cst = arith.constant 1.000000e+00 : f32
    %cst_3 = arith.constant 0.000000e+00 : f32
    %10 = vector.broadcast %cst : f32 to vector<384x128xf32>
    %11 = vector.broadcast %cst_3 : f32 to vector<384x128xf32>
    %12 = arith.select %9, %10, %11 : vector<384x128xi1>, vector<384x128xf32>
    %13 = arith.truncf %12 : vector<384x128xf32> to vector<384x128xbf16>
    %c0_4 = arith.constant 0 : index
    %c0_5 = arith.constant 0 : index
    %14 = vector.load %arg3[%c0_4, %c0_5] : memref<128x384xbf16, #tpu.memory_space<vmem>>, vector<128x384xbf16>
    %cst_6 = arith.constant dense<0.000000e+00> : vector<128x128xf32>
    %15 = tpu.matmul %14, %13, %cst_6 {dimension_numbers = #tpu.dot_dimension_numbers<[1], [0], [0], [1], [0, 0, 1, 1], [], []>} : vector<128x384xbf16>, vector<384x128xbf16>, vector<128x128xf32> -> vector<128x128xf32>
    %16 = arith.truncf %15 : vector<128x128xf32> to vector<128x128xbf16>
    %c0_7 = arith.constant 0 : index
    %c0_8 = arith.constant 0 : index
    %17 = vector.load %arg4[%c0_7, %c0_8] : memref<128x128xbf16, #tpu.memory_space<vmem>>, vector<128x128xbf16>
    %cst_9 = arith.constant dense<0.000000e+00> : vector<128x128xf32>
    %18 = tpu.matmul %17, %16, %cst_9 {dimension_numbers = #tpu.dot_dimension_numbers<[1], [0], [0], [1], [0, 0, 1, 1], [], []>} : vector<128x128xbf16>, vector<128x128xbf16>, vector<128x128xf32> -> vector<128x128xf32>
    %c0_10 = arith.constant 0 : index
    %c0_11 = arith.constant 0 : index
    %19 = vector.load %arg5[%c0_10, %c0_11] : memref<128x1xf32, #tpu.memory_space<vmem>>, vector<128x1xf32>
    %20 = vector.broadcast %19 : vector<128x1xf32> to vector<128x128xf32>
    %21 = arith.addf %18, %20 : vector<128x128xf32>
    %cst_12 = arith.constant 0.000000e+00 : f32
    %22 = vector.broadcast %cst_12 : f32 to vector<128x128xf32>
    %23 = arith.maximumf %21, %22 : vector<128x128xf32>
    %c0_13 = arith.constant 0 : index
    %c0_14 = arith.constant 0 : index
    %24 = vector.load %arg6[%c0_13, %c0_14] : memref<64x128xbf16, #tpu.memory_space<vmem>>, vector<64x128xbf16>
    %25 = arith.truncf %23 : vector<128x128xf32> to vector<128x128xbf16>
    %cst_15 = arith.constant dense<0.000000e+00> : vector<64x128xf32>
    %26 = tpu.matmul %24, %25, %cst_15 {dimension_numbers = #tpu.dot_dimension_numbers<[1], [0], [0], [1], [0, 0, 1, 1], [], []>} : vector<64x128xbf16>, vector<128x128xbf16>, vector<64x128xf32> -> vector<64x128xf32>
    %c0_16 = arith.constant 0 : index
    %c0_17 = arith.constant 0 : index
    %27 = vector.load %arg7[%c0_16, %c0_17] : memref<64x1xf32, #tpu.memory_space<vmem>>, vector<64x1xf32>
    %28 = vector.broadcast %27 : vector<64x1xf32> to vector<64x128xf32>
    %29 = arith.addf %26, %28 : vector<64x128xf32>
    %cst_18 = arith.constant 0.000000e+00 : f32
    %30 = vector.broadcast %cst_18 : f32 to vector<64x128xf32>
    %31 = arith.maximumf %29, %30 : vector<64x128xf32>
    %c0_19 = arith.constant 0 : index
    %c0_20 = arith.constant 0 : index
    %32 = vector.load %arg8[%c0_19, %c0_20] : memref<1x64xbf16, #tpu.memory_space<vmem>>, vector<1x64xbf16>
    %33 = arith.truncf %31 : vector<64x128xf32> to vector<64x128xbf16>
    %cst_21 = arith.constant dense<0.000000e+00> : vector<1x128xf32>
    %34 = tpu.matmul %32, %33, %cst_21 {dimension_numbers = #tpu.dot_dimension_numbers<[1], [0], [0], [1], [0, 0, 1, 1], [], []>} : vector<1x64xbf16>, vector<64x128xbf16>, vector<1x128xf32> -> vector<1x128xf32>
    %c0_22 = arith.constant 0 : index
    %c0_23 = arith.constant 0 : index
    %35 = memref.load %arg9[%c0_22, %c0_23] : memref<1x1xf32, #tpu.memory_space<smem>>
    %36 = vector.broadcast %35 : f32 to vector<1x128xf32>
    %37 = arith.addf %34, %36 : vector<1x128xf32>
    %c0_24 = arith.constant 0 : index
    %c0_25 = arith.constant 0 : index
    %38 = vector.load %arg10[%c0_24, %c0_25] : memref<1x128xf32, #tpu.memory_space<vmem>>, vector<1x128xf32>
    tpu.vector_store %arg10[%c0_24, %c0_25], %37 {strides = array<i32>} : memref<1x128xf32, #tpu.memory_space<vmem>>, vector<1x128xf32>,
    return
  }
  func.func @transform_0(%arg0: i32) -> (i32, i32) {
    %c0_i32 = arith.constant 0 : i32
    %c0_i32_0 = arith.constant 0 : i32
    return %c0_i32, %arg0 : i32, i32
  }
  func.func @transform_1(%arg0: i32) -> (i32, i32) {
    %c0_i32 = arith.constant 0 : i32
    %c0_i32_0 = arith.constant 0 : i32
    return %c0_i32, %arg0 : i32, i32
  }
  func.func @transform_2(%arg0: i32) -> (i32, i32) {
    %c0_i32 = arith.constant 0 : i32
    %c0_i32_0 = arith.constant 0 : i32
    %c0_i32_1 = arith.constant 0 : i32
    return %c0_i32, %c0_i32_0 : i32, i32
  }
  func.func @transform_3(%arg0: i32) -> (i32, i32) {
    %c0_i32 = arith.constant 0 : i32
    %c0_i32_0 = arith.constant 0 : i32
    %c0_i32_1 = arith.constant 0 : i32
    return %c0_i32, %c0_i32_0 : i32, i32
  }
  func.func @transform_4(%arg0: i32) -> (i32, i32) {
    %c0_i32 = arith.constant 0 : i32
    %c0_i32_0 = arith.constant 0 : i32
    %c0_i32_1 = arith.constant 0 : i32
    return %c0_i32, %c0_i32_0 : i32, i32
  }
  func.func @transform_5(%arg0: i32) -> (i32, i32) {
    %c0_i32 = arith.constant 0 : i32
    %c0_i32_0 = arith.constant 0 : i32
    %c0_i32_1 = arith.constant 0 : i32
    return %c0_i32, %c0_i32_0 : i32, i32
  }
  func.func @transform_6(%arg0: i32) -> (i32, i32) {
    %c0_i32 = arith.constant 0 : i32
    %c0_i32_0 = arith.constant 0 : i32
    %c0_i32_1 = arith.constant 0 : i32
    return %c0_i32, %c0_i32_0 : i32, i32
  }
  func.func @transform_7(%arg0: i32) -> (i32, i32) {
    %c0_i32 = arith.constant 0 : i32
    %c0_i32_0 = arith.constant 0 : i32
    %c0_i32_1 = arith.constant 0 : i32
    return %c0_i32, %c0_i32_0 : i32, i32
  }
  func.func @transform_8(%arg0: i32) -> (i32, i32) {
    %c0_i32 = arith.constant 0 : i32
    %c0_i32_0 = arith.constant 0 : i32
    %c0_i32_1 = arith.constant 0 : i32
    return %c0_i32, %c0_i32_0 : i32, i32
  }
  func.func @transform_9(%arg0: i32) -> (i32, i32) {
    %c0_i32 = arith.constant 0 : i32
    %c0_i32_0 = arith.constant 0 : i32
    return %c0_i32, %arg0 : i32, i32
  }
}

</mosaic_0001>

<llo_original>
// kernel: tpu_custom_call.1
$region0: #{tpu_custom_call.1}
  #allocation0 [shape = 'u32[]', space=smem, size = 0x4, offset = 0x4, fixed_abs, tag = 'smem constant byte address 0x4 - core index']
  #allocation1 [shape = 'u32[144,128]{1,0:T(1,128)}', space=vmem, size = 0x12000, scoped, tag = 'internal scratch']
  #allocation2 [shape = 'f32[1,1]{1,0:T(1,128)S(6)}', space=smem, size = 0x200, scoped, tag = 'scoped memory for tpu_custom_call.1']
  %s0 = inlined_call_operand.vmem [shape: s32[1,128], index: 0, kind: input, shape index: {}]
  %s1 = inlined_call_operand.vmem [shape: s32[1,128], index: 1, kind: input, shape index: {}]
  %s2 = inlined_call_operand.vmem [shape: bf16[128,384], index: 2, kind: input, shape index: {}]
  %s3 = inlined_call_operand.hbm [shape: bf16[128,128], index: 3, kind: input, shape index: {}]
  %s4 = inlined_call_operand.vmem [shape: f32[128,1], index: 4, kind: input, shape index: {}]
  %s5 = inlined_call_operand.hbm [shape: bf16[64,128], index: 5, kind: input, shape index: {}]
  %s6 = inlined_call_operand.vmem [shape: f32[64,1], index: 6, kind: input, shape index: {}]
  %s7 = inlined_call_operand.vmem [shape: bf16[1,64], index: 7, kind: input, shape index: {}]
  %s8 = inlined_call_operand.<no memory space> [shape: f32[1,1], index: 8, kind: input, shape index: {}]
  %s9 = inlined_call_operand.hbm [shape: f32[1,128], index: 9, kind: output, shape index: {}]
  %s10 = sld [smem:[#allocation0]]
  $region54: #{tpu_custom_call.1} parent=0
    _
  %s12 = ssub.s32 1, %s10
  %s13 = scalar_select 0, %s12, %s10
  %14 = sst [smem:[#allocation2]] %s8
  $region1: #{tpu_custom_call.1} parent=0
    #allocation3 [shape = 'u8[32768]{0}', space=vmem, size = 0x8000, scoped, tag = 'input window, operand 3, single buffered']
    #allocation4 [shape = 's32[1]{0}', space=sflag, size = 0x4, scoped, tag = 'scoped memory for tpu_custom_call.1']
    #allocation5 [shape = 's32[1]{0}', space=sflag, size = 0x4, scoped, tag = 'scoped memory for tpu_custom_call.1']
    #allocation6 [shape = 'u8[16384]{0}', space=vmem, size = 0x4000, scoped, tag = 'input window, operand 5, single buffered']
    #allocation7 [shape = 's32[1]{0}', space=sflag, size = 0x4, scoped, tag = 'scoped memory for tpu_custom_call.1']
    #allocation8 [shape = 'u8[512]{0}', space=vmem, size = 0x400, scoped, tag = 'output window, operand 0, single buffered']
    %15 = vsyncpa [#allocation4], 0
    %16 = vsyncpa [#allocation7], 0
    %17 = vsyncpa [#allocation5], 0
    // Predicated region
    $region2: #{tpu_custom_call.1} parent=1 // pred_check
      _
    $region3: #{tpu_custom_call.1} parent=1 // pred_check_branch
      %19 = sbr.rel (0) target = $region5
    $region4: #{tpu_custom_call.1} parent=1 // pred_region
      _
    $region5: #{tpu_custom_call.1} parent=1 // pred_fallthru
      _
    // Predicated region
    $region6: #{tpu_custom_call.1} parent=1 // pred_check
      _
    $region7: #{tpu_custom_call.1} parent=1 // pred_check_branch
      %21 = sbr.rel (0) target = $region9
    $region8: #{tpu_custom_call.1} parent=1 // pred_region
      _
    $region9: #{tpu_custom_call.1} parent=1 // pred_fallthru
      _
    // Predicated region
    $region10: #{tpu_custom_call.1} parent=1 // pred_check
      _
    $region11: #{tpu_custom_call.1} parent=1 // pred_check_branch
      %23 = sbr.rel (0) target = $region13
    $region12: #{tpu_custom_call.1} parent=1 // pred_region
      _
    $region13: #{tpu_custom_call.1} parent=1 // pred_fallthru
      _
    // Predicated region
    $region14: #{tpu_custom_call.1} parent=1 // pred_check
      _
    $region15: #{tpu_custom_call.1} parent=1 // pred_check_branch
      %25 = sbr.rel (0) target = $region17
    $region16: #{tpu_custom_call.1} parent=1 // pred_region
      %s27 = ssub.s32 1024, 1024
      %28 = vsyncadd [#allocation4], %s27
      %s29 = sshll.u32 [#allocation3], 4
      %s30 = int_to_ptr.vmem [resolvable:$true] %s29
      %35 = dma.hbm_to_vmem [thread:$0]  %s3, 1024, %s30, [#allocation4], 64, 64, 4
    $region17: #{tpu_custom_call.1} parent=1 // pred_fallthru
      _
    // Predicated region
    $region18: #{tpu_custom_call.1} parent=1 // pred_check
      _
    $region19: #{tpu_custom_call.1} parent=1 // pred_check_branch
      %37 = sbr.rel (0) target = $region21
    $region20: #{tpu_custom_call.1} parent=1 // pred_region
      _
    $region21: #{tpu_custom_call.1} parent=1 // pred_fallthru
      _
    // Predicated region
    $region22: #{tpu_custom_call.1} parent=1 // pred_check
      _
    $region23: #{tpu_custom_call.1} parent=1 // pred_check_branch
      %39 = sbr.rel (0) target = $region25
    $region24: #{tpu_custom_call.1} parent=1 // pred_region
      %s41 = ssub.s32 512, 512
      %42 = vsyncadd [#allocation7], %s41
      %s43 = sshll.u32 [#allocation6], 4
      %s44 = int_to_ptr.vmem [resolvable:$true] %s43
      %49 = dma.hbm_to_vmem [thread:$0]  %s5, 512, %s44, [#allocation7], 64, 64, 4
    $region25: #{tpu_custom_call.1} parent=1 // pred_fallthru
      _
    // Predicated region
    $region26: #{tpu_custom_call.1} parent=1 // pred_check
      _
    $region27: #{tpu_custom_call.1} parent=1 // pred_check_branch
      %51 = sbr.rel (0) target = $region29
    $region28: #{tpu_custom_call.1} parent=1 // pred_region
      _
    $region29: #{tpu_custom_call.1} parent=1 // pred_fallthru
      _
    // Predicated region
    $region30: #{tpu_custom_call.1} parent=1 // pred_check
      _
    $region31: #{tpu_custom_call.1} parent=1 // pred_check_branch
      %53 = sbr.rel (0) target = $region33
    $region32: #{tpu_custom_call.1} parent=1 // pred_region
      _
    $region33: #{tpu_custom_call.1} parent=1 // pred_fallthru
      _
    // Predicated region
    $region34: #{tpu_custom_call.1} parent=1 // pred_check
      _
    $region35: #{tpu_custom_call.1} parent=1 // pred_check_branch
      %55 = sbr.rel (0) target = $region37
    $region36: #{tpu_custom_call.1} parent=1 // pred_region
      _
    $region37: #{tpu_custom_call.1} parent=1 // pred_fallthru
      _
    // Predicated region
    $region38: #{tpu_custom_call.1} parent=1 // pred_check
      _
    $region39: #{tpu_custom_call.1} parent=1 // pred_check_branch
      %57 = sbr.rel (0) target = $region41
    $region40: #{tpu_custom_call.1} parent=1 // pred_region
      %58 = dma.done [#allocation4], 1024
    $region41: #{tpu_custom_call.1} parent=1 // pred_fallthru
      _
    // Predicated region
    $region42: #{tpu_custom_call.1} parent=1 // pred_check
      _
    $region43: #{tpu_custom_call.1} parent=1 // pred_check_branch
      %60 = sbr.rel (0) target = $region45
    $region44: #{tpu_custom_call.1} parent=1 // pred_region
      %61 = dma.done [#allocation7], 512
    $region45: #{tpu_custom_call.1} parent=1 // pred_fallthru
      _
    %v63 = vlaneseq
    %v64 = vshrl.u32 %v63, 7
    %v65 = vadd.s32 %v64, 8
    %v66 = vadd.s32 %v64, 16
    %v67 = vadd.s32 %v64, 24
    %v68 = vadd.s32 %v64, 32
    %v69 = vadd.s32 %v64, 40
    %v70 = vadd.s32 %v64, 48
    %v71 = vadd.s32 %v64, 56
    %v72 = vadd.s32 %v64, 64
    %v73 = vadd.s32 %v64, 72
    %v74 = vadd.s32 %v64, 80
    %v75 = vadd.s32 %v64, 88
    %v76 = vadd.s32 %v64, 96
    %v77 = vadd.s32 %v64, 104
    %v78 = vadd.s32 %v64, 112
    %v79 = vadd.s32 %v64, 120
    %v80 = vadd.s32 %v64, 128
    %v81 = vadd.s32 %v64, 136
    %v82 = vadd.s32 %v64, 144
    %v83 = vadd.s32 %v64, 152
    %v84 = vadd.s32 %v64, 160
    %v85 = vadd.s32 %v64, 168
    %v86 = vadd.s32 %v64, 176
    %v87 = vadd.s32 %v64, 184
    %v88 = vadd.s32 %v64, 192
    %v89 = vadd.s32 %v64, 200
    %v90 = vadd.s32 %v64, 208
    %v91 = vadd.s32 %v64, 216
    %v92 = vadd.s32 %v64, 224
    %v93 = vadd.s32 %v64, 232
    %v94 = vadd.s32 %v64, 240
    %v95 = vadd.s32 %v64, 248
    %v96 = vadd.s32 %v64, 256
    %v97 = vadd.s32 %v64, 264
    %v98 = vadd.s32 %v64, 272
    %v99 = vadd.s32 %v64, 280
    %v100 = vadd.s32 %v64, 288
    %v101 = vadd.s32 %v64, 296
    %v102 = vadd.s32 %v64, 304
    %v103 = vadd.s32 %v64, 312
    %v104 = vadd.s32 %v64, 320
    %v105 = vadd.s32 %v64, 328
    %v106 = vadd.s32 %v64, 336
    %v107 = vadd.s32 %v64, 344
    %v108 = vadd.s32 %v64, 352
    %v109 = vadd.s32 %v64, 360
    %v110 = vadd.s32 %v64, 368
    %v111 = vadd.s32 %v64, 376
    %v112 = vld [vmem:[%s0] sm:$0x1]
    %v113 = vlaneseq
    %v114 = vshrl.u32 %v113, 7
    %v115 = vsub.s32 0, %v114
    %v116 = vrot.slane %v112, %v115
    %vm117 = vcmp.eq.s32.totalorder %v64, %v116
    %vm118 = vcmp.eq.s32.totalorder %v65, %v116
    %vm119 = vcmp.eq.s32.totalorder %v66, %v116
    %vm120 = vcmp.eq.s32.totalorder %v67, %v116
    %vm121 = vcmp.eq.s32.totalorder %v68, %v116
    %vm122 = vcmp.eq.s32.totalorder %v69, %v116
    %vm123 = vcmp.eq.s32.totalorder %v70, %v116
    %vm124 = vcmp.eq.s32.totalorder %v71, %v116
    %vm125 = vcmp.eq.s32.totalorder %v72, %v116
    %vm126 = vcmp.eq.s32.totalorder %v73, %v116
    %vm127 = vcmp.eq.s32.totalorder %v74, %v116
    %vm128 = vcmp.eq.s32.totalorder %v75, %v116
    %vm129 = vcmp.eq.s32.totalorder %v76, %v116
    %vm130 = vcmp.eq.s32.totalorder %v77, %v116
    %vm131 = vcmp.eq.s32.totalorder %v78, %v116
    %vm132 = vcmp.eq.s32.totalorder %v79, %v116
    %vm133 = vcmp.eq.s32.totalorder %v80, %v116
    %vm134 = vcmp.eq.s32.totalorder %v81, %v116
    %vm135 = vcmp.eq.s32.totalorder %v82, %v116
    %vm136 = vcmp.eq.s32.totalorder %v83, %v116
    %vm137 = vcmp.eq.s32.totalorder %v84, %v116
    %vm138 = vcmp.eq.s32.totalorder %v85, %v116
    %vm139 = vcmp.eq.s32.totalorder %v86, %v116
    %vm140 = vcmp.eq.s32.totalorder %v87, %v116
    %vm141 = vcmp.eq.s32.totalorder %v88, %v116
    %vm142 = vcmp.eq.s32.totalorder %v89, %v116
    %vm143 = vcmp.eq.s32.totalorder %v90, %v116
    %vm144 = vcmp.eq.s32.totalorder %v91, %v116
    %vm145 = vcmp.eq.s32.totalorder %v92, %v116
    %vm146 = vcmp.eq.s32.totalorder %v93, %v116
    %vm147 = vcmp.eq.s32.totalorder %v94, %v116
    %vm148 = vcmp.eq.s32.totalorder %v95, %v116
    %vm149 = vcmp.eq.s32.totalorder %v96, %v116
    %vm150 = vcmp.eq.s32.totalorder %v97, %v116
    %vm151 = vcmp.eq.s32.totalorder %v98, %v116
    %vm152 = vcmp.eq.s32.totalorder %v99, %v116
    %vm153 = vcmp.eq.s32.totalorder %v100, %v116
    %vm154 = vcmp.eq.s32.totalorder %v101, %v116
    %vm155 = vcmp.eq.s32.totalorder %v102, %v116
    %vm156 = vcmp.eq.s32.totalorder %v103, %v116
    %vm157 = vcmp.eq.s32.totalorder %v104, %v116
    %vm158 = vcmp.eq.s32.totalorder %v105, %v116
    %vm159 = vcmp.eq.s32.totalorder %v106, %v116
    %vm160 = vcmp.eq.s32.totalorder %v107, %v116
    %vm161 = vcmp.eq.s32.totalorder %v108, %v116
    %vm162 = vcmp.eq.s32.totalorder %v109, %v116
    %vm163 = vcmp.eq.s32.totalorder %v110, %v116
    %vm164 = vcmp.eq.s32.totalorder %v111, %v116
    %v165 = vld [vmem:[%s1] sm:$0x1]
    %v166 = vadd.s32 %v165, 128
    %v167 = vlaneseq
    %v168 = vshrl.u32 %v167, 7
    %v169 = vsub.s32 0, %v168
    %v170 = vrot.slane %v166, %v169
    %vm171 = vcmp.eq.s32.totalorder %v64, %v170
    %vm172 = vcmp.eq.s32.totalorder %v65, %v170
    %vm173 = vcmp.eq.s32.totalorder %v66, %v170
    %vm174 = vcmp.eq.s32.totalorder %v67, %v170
    %vm175 = vcmp.eq.s32.totalorder %v68, %v170
    %vm176 = vcmp.eq.s32.totalorder %v69, %v170
    %vm177 = vcmp.eq.s32.totalorder %v70, %v170
    %vm178 = vcmp.eq.s32.totalorder %v71, %v170
    %vm179 = vcmp.eq.s32.totalorder %v72, %v170
    %vm180 = vcmp.eq.s32.totalorder %v73, %v170
    %vm181 = vcmp.eq.s32.totalorder %v74, %v170
    %vm182 = vcmp.eq.s32.totalorder %v75, %v170
    %vm183 = vcmp.eq.s32.totalorder %v76, %v170
    %vm184 = vcmp.eq.s32.totalorder %v77, %v170
    %vm185 = vcmp.eq.s32.totalorder %v78, %v170
    %vm186 = vcmp.eq.s32.totalorder %v79, %v170
    %vm187 = vcmp.eq.s32.totalorder %v80, %v170
    %vm188 = vcmp.eq.s32.totalorder %v81, %v170
    %vm189 = vcmp.eq.s32.totalorder %v82, %v170
    %vm190 = vcmp.eq.s32.totalorder %v83, %v170
    %vm191 = vcmp.eq.s32.totalorder %v84, %v170
    %vm192 = vcmp.eq.s32.totalorder %v85, %v170
    %vm193 = vcmp.eq.s32.totalorder %v86, %v170
    %vm194 = vcmp.eq.s32.totalorder %v87, %v170
    %vm195 = vcmp.eq.s32.totalorder %v88, %v170
    %vm196 = vcmp.eq.s32.totalorder %v89, %v170
    %vm197 = vcmp.eq.s32.totalorder %v90, %v170
    %vm198 = vcmp.eq.s32.totalorder %v91, %v170
    %vm199 = vcmp.eq.s32.totalorder %v92, %v170
    %vm200 = vcmp.eq.s32.totalorder %v93, %v170
    %vm201 = vcmp.eq.s32.totalorder %v94, %v170
    %vm202 = vcmp.eq.s32.totalorder %v95, %v170
    %vm203 = vcmp.eq.s32.totalorder %v96, %v170
    %vm204 = vcmp.eq.s32.totalorder %v97, %v170
    %vm205 = vcmp.eq.s32.totalorder %v98, %v170
    %vm206 = vcmp.eq.s32.totalorder %v99, %v170
    %vm207 = vcmp.eq.s32.totalorder %v100, %v170
    %vm208 = vcmp.eq.s32.totalorder %v101, %v170
    %vm209 = vcmp.eq.s32.totalorder %v102, %v170
    %vm210 = vcmp.eq.s32.totalorder %v103, %v170
    %vm211 = vcmp.eq.s32.totalorder %v104, %v170
    %vm212 = vcmp.eq.s32.totalorder %v105, %v170
    %vm213 = vcmp.eq.s32.totalorder %v106, %v170
    %vm214 = vcmp.eq.s32.totalorder %v107, %v170
    %vm215 = vcmp.eq.s32.totalorder %v108, %v170
    %vm216 = vcmp.eq.s32.totalorder %v109, %v170
    %vm217 = vcmp.eq.s32.totalorder %v110, %v170
    %vm218 = vcmp.eq.s32.totalorder %v111, %v170
    %vm219 = vmor %vm117, %vm171
    %vm220 = vmor %vm118, %vm172
    %vm221 = vmor %vm119, %vm173
    %vm222 = vmor %vm120, %vm174
    %vm223 = vmor %vm121, %vm175
    %vm224 = vmor %vm122, %vm176
    %vm225 = vmor %vm123, %vm177
    %vm226 = vmor %vm124, %vm178
    %vm227 = vmor %vm125, %vm179
    %vm228 = vmor %vm126, %vm180
    %vm229 = vmor %vm127, %vm181
    %vm230 = vmor %vm128, %vm182
    %vm231 = vmor %vm129, %vm183
    %vm232 = vmor %vm130, %vm184
    %vm233 = vmor %vm131, %vm185
    %vm234 = vmor %vm132, %vm186
    %vm235 = vmor %vm133, %vm187
    %vm236 = vmor %vm134, %vm188
    %vm237 = vmor %vm135, %vm189
    %vm238 = vmor %vm136, %vm190
    %vm239 = vmor %vm137, %vm191
    %vm240 = vmor %vm138, %vm192
    %vm241 = vmor %vm139, %vm193
    %vm242 = vmor %vm140, %vm194
    %vm243 = vmor %vm141, %vm195
    %vm244 = vmor %vm142, %vm196
    %vm245 = vmor %vm143, %vm197
    %vm246 = vmor %vm144, %vm198
    %vm247 = vmor %vm145, %vm199
    %vm248 = vmor %vm146, %vm200
    %vm249 = vmor %vm147, %vm201
    %vm250 = vmor %vm148, %vm202
    %vm251 = vmor %vm149, %vm203
    %vm252 = vmor %vm150, %vm204
    %vm253 = vmor %vm151, %vm205
    %vm254 = vmor %vm152, %vm206
    %vm255 = vmor %vm153, %vm207
    %vm256 = vmor %vm154, %vm208
    %vm257 = vmor %vm155, %vm209
    %vm258 = vmor %vm156, %vm210
    %vm259 = vmor %vm157, %vm211
    %vm260 = vmor %vm158, %vm212
    %vm261 = vmor %vm159, %vm213
    %vm262 = vmor %vm160, %vm214
    %vm263 = vmor %vm161, %vm215
    %vm264 = vmor %vm162, %vm216
    %vm265 = vmor %vm163, %vm217
    %vm266 = vmor %vm164, %vm218
    %v267 = vsel %vm219, 1.0, 0.0
    %v268 = vsel %vm220, 1.0, 0.0
    %v269 = vsel %vm221, 1.0, 0.0
    %v270 = vsel %vm222, 1.0, 0.0
    %v271 = vsel %vm223, 1.0, 0.0
    %v272 = vsel %vm224, 1.0, 0.0
    %v273 = vsel %vm225, 1.0, 0.0
    %v274 = vsel %vm226, 1.0, 0.0
    %v275 = vsel %vm227, 1.0, 0.0
    %v276 = vsel %vm228, 1.0, 0.0
    %v277 = vsel %vm229, 1.0, 0.0
    %v278 = vsel %vm230, 1.0, 0.0
    %v279 = vsel %vm231, 1.0, 0.0
    %v280 = vsel %vm232, 1.0, 0.0
    %v281 = vsel %vm233, 1.0, 0.0
    %v282 = vsel %vm234, 1.0, 0.0
    %v283 = vsel %vm235, 1.0, 0.0
    %v284 = vsel %vm236, 1.0, 0.0
    %v285 = vsel %vm237, 1.0, 0.0
    %v286 = vsel %vm238, 1.0, 0.0
    %v287 = vsel %vm239, 1.0, 0.0
    %v288 = vsel %vm240, 1.0, 0.0
    %v289 = vsel %vm241, 1.0, 0.0
    %v290 = vsel %vm242, 1.0, 0.0
    %v291 = vsel %vm243, 1.0, 0.0
    %v292 = vsel %vm244, 1.0, 0.0
    %v293 = vsel %vm245, 1.0, 0.0
    %v294 = vsel %vm246, 1.0, 0.0
    %v295 = vsel %vm247, 1.0, 0.0
    %v296 = vsel %vm248, 1.0, 0.0
    %v297 = vsel %vm249, 1.0, 0.0
    %v298 = vsel %vm250, 1.0, 0.0
    %v299 = vsel %vm251, 1.0, 0.0
    %v300 = vsel %vm252, 1.0, 0.0
    %v301 = vsel %vm253, 1.0, 0.0
    %v302 = vsel %vm254, 1.0, 0.0
    %v303 = vsel %vm255, 1.0, 0.0
    %v304 = vsel %vm256, 1.0, 0.0
    %v305 = vsel %vm257, 1.0, 0.0
    %v306 = vsel %vm258, 1.0, 0.0
    %v307 = vsel %vm259, 1.0, 0.0
    %v308 = vsel %vm260, 1.0, 0.0
    %v309 = vsel %vm261, 1.0, 0.0
    %v310 = vsel %vm262, 1.0, 0.0
    %v311 = vsel %vm263, 1.0, 0.0
    %v312 = vsel %vm264, 1.0, 0.0
    %v313 = vsel %vm265, 1.0, 0.0
    %v314 = vsel %vm266, 1.0, 0.0
    %v315 = vpack.c.bf16 %v268, %v267
    %v316 = vpack.c.bf16 %v270, %v269
    %v317 = vpack.c.bf16 %v272, %v271
    %v318 = vpack.c.bf16 %v274, %v273
    %v319 = vpack.c.bf16 %v276, %v275
    %v320 = vpack.c.bf16 %v278, %v277
    %v321 = vpack.c.bf16 %v280, %v279
    %v322 = vpack.c.bf16 %v282, %v281
    %v323 = vpack.c.bf16 %v284, %v283
    %v324 = vpack.c.bf16 %v286, %v285
    %v325 = vpack.c.bf16 %v288, %v287
    %v326 = vpack.c.bf16 %v290, %v289
    %v327 = vpack.c.bf16 %v292, %v291
    %v328 = vpack.c.bf16 %v294, %v293
    %v329 = vpack.c.bf16 %v296, %v295
    %v330 = vpack.c.bf16 %v298, %v297
    %v331 = vpack.c.bf16 %v300, %v299
    %v332 = vpack.c.bf16 %v302, %v301
    %v333 = vpack.c.bf16 %v304, %v303
    %v334 = vpack.c.bf16 %v306, %v305
    %v335 = vpack.c.bf16 %v308, %v307
    %v336 = vpack.c.bf16 %v310, %v309
    %v337 = vpack.c.bf16 %v312, %v311
    %v338 = vpack.c.bf16 %v314, %v313
    %v339 = vld [vmem:[%s2] sm:$0xff]
    %v340 = vld [vmem:[%s2 + $0x8] sm:$0xf]
    %v341 = vld [vmem:[%s2 + $0xc] sm:$0xff]
    %v342 = vld [vmem:[%s2 + $0x14] sm:$0xf]
    %v343 = vld [vmem:[%s2 + $0x18] sm:$0xff]
    %v344 = vld [vmem:[%s2 + $0x20] sm:$0xf]
    %v345 = vld [vmem:[%s2 + $0x24] sm:$0xff]
    %v346 = vld [vmem:[%s2 + $0x2c] sm:$0xf]
    %v347 = vld [vmem:[%s2 + $0x30] sm:$0xff]
    %v348 = vld [vmem:[%s2 + $0x38] sm:$0xf]
    %v349 = vld [vmem:[%s2 + $0x3c] sm:$0xff]
    %v350 = vld [vmem:[%s2 + $0x44] sm:$0xf]
    %v351 = vld [vmem:[%s2 + $0x48] sm:$0xff]
    %v352 = vld [vmem:[%s2 + $0x50] sm:$0xf]
    %v353 = vld [vmem:[%s2 + $0x54] sm:$0xff]
    %v354 = vld [vmem:[%s2 + $0x5c] sm:$0xf]
    %v355 = vld [vmem:[%s2 + $0x60] sm:$0xff]
    %v356 = vld [vmem:[%s2 + $0x68] sm:$0xf]
    %v357 = vld [vmem:[%s2 + $0x6c] sm:$0xff]
    %v358 = vld [vmem:[%s2 + $0x74] sm:$0xf]
    %v359 = vld [vmem:[%s2 + $0x78] sm:$0xff]
    %v360 = vld [vmem:[%s2 + $0x80] sm:$0xf]
    %v361 = vld [vmem:[%s2 + $0x84] sm:$0xff]
    %v362 = vld [vmem:[%s2 + $0x8c] sm:$0xf]
    %v363 = vld [vmem:[%s2 + $0x90] sm:$0xff]
    %v364 = vld [vmem:[%s2 + $0x98] sm:$0xf]
    %v365 = vld [vmem:[%s2 + $0x9c] sm:$0xff]
    %v366 = vld [vmem:[%s2 + $0xa4] sm:$0xf]
    %v367 = vld [vmem:[%s2 + $0xa8] sm:$0xff]
    %v368 = vld [vmem:[%s2 + $0xb0] sm:$0xf]
    %v369 = vld [vmem:[%s2 + $0xb4] sm:$0xff]
    %v370 = vld [vmem:[%s2 + $0xbc] sm:$0xf]
    %v403 = vunpack.c.l.b16 %v339
    %v404 = vunpack.c.h.b16 %v339
    %v405 = vunpack.c.l.b16 %v340
    %v406 = vunpack.c.l.b16 %v341
    %v407 = vunpack.c.h.b16 %v341
    %v408 = vunpack.c.l.b16 %v342
    %v409 = vunpack.c.l.b16 %v343
    %v410 = vunpack.c.h.b16 %v343
    %v411 = vunpack.c.l.b16 %v344
    %v412 = vunpack.c.l.b16 %v345
    %v413 = vunpack.c.h.b16 %v345
    %v414 = vunpack.c.l.b16 %v346
    %v415 = vunpack.c.l.b16 %v347
    %v416 = vunpack.c.h.b16 %v347
    %v417 = vunpack.c.l.b16 %v348
    %v418 = vunpack.c.l.b16 %v349
    %v419 = vunpack.c.h.b16 %v349
    %v420 = vunpack.c.l.b16 %v350
    %v421 = vunpack.c.l.b16 %v351
    %v422 = vunpack.c.h.b16 %v351
    %v423 = vunpack.c.l.b16 %v352
    %v424 = vunpack.c.l.b16 %v353
    %v425 = vunpack.c.h.b16 %v353
    %v426 = vunpack.c.l.b16 %v354
    %v427 = vunpack.c.l.b16 %v355
    %v428 = vunpack.c.h.b16 %v355
    %v429 = vunpack.c.l.b16 %v356
    %v430 = vunpack.c.l.b16 %v357
    %v431 = vunpack.c.h.b16 %v357
    %v432 = vunpack.c.l.b16 %v358
    %v433 = vunpack.c.l.b16 %v359
    %v434 = vunpack.c.h.b16 %v359
    %v435 = vunpack.c.l.b16 %v360
    %v436 = vunpack.c.l.b16 %v361
    %v437 = vunpack.c.h.b16 %v361
    %v438 = vunpack.c.l.b16 %v362
    %v439 = vunpack.c.l.b16 %v363
    %v440 = vunpack.c.h.b16 %v363
    %v441 = vunpack.c.l.b16 %v364
    %v442 = vunpack.c.l.b16 %v365
    %v443 = vunpack.c.h.b16 %v365
    %v444 = vunpack.c.l.b16 %v366
    %v445 = vunpack.c.l.b16 %v367
    %v446 = vunpack.c.h.b16 %v367
    %v447 = vunpack.c.l.b16 %v368
    %v448 = vunpack.c.l.b16 %v369
    %v449 = vunpack.c.h.b16 %v369
    %v450 = vunpack.c.l.b16 %v370
    %v451 = vpack.c.b16 %v406, %v403
    %v452 = vpack.c.b16 %v407, %v404
    %v453 = vpack.c.b16 %v408, %v405
    %v454 = vpack.c.b16 %v412, %v409
    %v455 = vpack.c.b16 %v413, %v410
    %v456 = vpack.c.b16 %v414, %v411
    %v457 = vpack.c.b16 %v418, %v415
    %v458 = vpack.c.b16 %v419, %v416
    %v459 = vpack.c.b16 %v420, %v417
    %v460 = vpack.c.b16 %v424, %v421
    %v461 = vpack.c.b16 %v425, %v422
    %v462 = vpack.c.b16 %v426, %v423
    %v463 = vpack.c.b16 %v430, %v427
    %v464 = vpack.c.b16 %v431, %v428
    %v465 = vpack.c.b16 %v432, %v429
    %v466 = vpack.c.b16 %v436, %v433
    %v467 = vpack.c.b16 %v437, %v434
    %v468 = vpack.c.b16 %v438, %v435
    %v469 = vpack.c.b16 %v442, %v439
    %v470 = vpack.c.b16 %v443, %v440
    %v471 = vpack.c.b16 %v444, %v441
    %v472 = vpack.c.b16 %v448, %v445
    %v473 = vpack.c.b16 %v449, %v446
    %v474 = vpack.c.b16 %v450, %v447
    %499 = vmatprep.subr.bf16.mxu0 0
    %500 = vmatpush1.bf16.msra.mxu0 %v315
    %501 = vmatprep.subr.bf16.mxu0 0
    %502 = vmatpush1.bf16.msra.mxu0 %v316
    %503 = vmatprep.subr.bf16.mxu0 0
    %504 = vmatpush1.bf16.msra.mxu0 %v317
    %505 = vmatprep.subr.bf16.mxu0 0
    %506 = vmatpush1.bf16.msra.mxu0 %v318
    %507 = vmatprep.subr.bf16.mxu0 0
    %508 = vmatpush1.bf16.msra.mxu0 %v319
    %509 = vmatprep.subr.bf16.mxu0 0
    %510 = vmatpush1.bf16.msra.mxu0 %v320
    %511 = vmatprep.subr.bf16.mxu0 0
    %512 = vmatpush1.bf16.msra.mxu0 %v321
    %513 = vmatprep.subr.bf16.mxu0 0
    %514 = vmatpush1.bf16.msra.mxu0 %v322
    %515 = vmatprep.subr.bf16.mxu0 0
    %516 = vmatpush1.bf16.msra.mxu0 %v323
    %517 = vmatprep.subr.bf16.mxu0 0
    %518 = vmatpush1.bf16.msra.mxu0 %v324
    %519 = vmatprep.subr.bf16.mxu0 0
    %520 = vmatpush1.bf16.msra.mxu0 %v325
    %521 = vmatprep.subr.bf16.mxu0 0
    %522 = vmatpush1.bf16.msra.mxu0 %v326
    %523 = vmatprep.subr.bf16.mxu0 0
    %524 = vmatpush1.bf16.msra.mxu0 %v327
    %525 = vmatprep.subr.bf16.mxu0 0
    %526 = vmatpush1.bf16.msra.mxu0 %v328
    %527 = vmatprep.subr.bf16.mxu0 0
    %528 = vmatpush1.bf16.msra.mxu0 %v329
    %529 = vmatprep.subr.bf16.mxu0 0
    %530 = vmatpush1.bf16.msra.mxu0 %v330
    %531 = vmatprep.mubr.bf16.mxu0 %v452
    %532 = vmatmul.mubr.bf16.gmra.mrb[0].mxu0 %v451
    %v533 = vpop.f32.mrb[0].mxu0
    %v534 = vadd.f32 0.0, %v533
    %v535 = vpop.f32.mrb[0].mxu0
    %v536 = vpop.f32.mrb[0].mxu0
    %v537 = vadd.f32 0.0, %v536
    %v538 = vpop.f32.mrb[0].mxu0
    %539 = vmatprep.mubr.bf16.mxu0 %v455
    %540 = vmatmul.mubr.bf16.gmra.mrb[0].mxu0 %v454
    %v541 = vpop.f32.mrb[0].mxu0
    %v542 = vadd.f32 0.0, %v541
    %v543 = vpop.f32.mrb[0].mxu0
    %v544 = vpop.f32.mrb[0].mxu0
    %v545 = vadd.f32 0.0, %v544
    %v546 = vpop.f32.mrb[0].mxu0
    %547 = vmatprep.mubr.bf16.mxu0 %v458
    %548 = vmatmul.mubr.bf16.gmra.mrb[0].mxu0 %v457
    %v549 = vpop.f32.mrb[0].mxu0
    %v550 = vadd.f32 0.0, %v549
    %v551 = vpop.f32.mrb[0].mxu0
    %v552 = vpop.f32.mrb[0].mxu0
    %v553 = vadd.f32 0.0, %v552
    %v554 = vpop.f32.mrb[0].mxu0
    %555 = vmatprep.mubr.bf16.mxu0 %v461
    %556 = vmatmul.mubr.bf16.gmra.mrb[0].mxu0 %v460
    %v557 = vpop.f32.mrb[0].mxu0
    %v558 = vadd.f32 0.0, %v557
    %v559 = vpop.f32.mrb[0].mxu0
    %v560 = vpop.f32.mrb[0].mxu0
    %v561 = vadd.f32 0.0, %v560
    %v562 = vpop.f32.mrb[0].mxu0
    %563 = vmatprep.mubr.bf16.mxu0 %v464
    %564 = vmatmul.mubr.bf16.gmra.mrb[0].mxu0 %v463
    %v565 = vpop.f32.mrb[0].mxu0
    %v566 = vadd.f32 0.0, %v565
    %v567 = vpop.f32.mrb[0].mxu0
    %v568 = vpop.f32.mrb[0].mxu0
    %v569 = vadd.f32 0.0, %v568
    %v570 = vpop.f32.mrb[0].mxu0
    %571 = vmatprep.mubr.bf16.mxu0 %v467
    %572 = vmatmul.mubr.bf16.gmra.mrb[0].mxu0 %v466
    %v573 = vpop.f32.mrb[0].mxu0
    %v574 = vadd.f32 0.0, %v573
    %v575 = vpop.f32.mrb[0].mxu0
    %v576 = vpop.f32.mrb[0].mxu0
    %v577 = vadd.f32 0.0, %v576
    %v578 = vpop.f32.mrb[0].mxu0
    %579 = vmatprep.mubr.bf16.mxu0 %v470
    %580 = vmatmul.mubr.bf16.gmra.mrb[0].mxu0 %v469
    %v581 = vpop.f32.mrb[0].mxu0
    %v582 = vadd.f32 0.0, %v581
    %v583 = vpop.f32.mrb[0].mxu0
    %v584 = vpop.f32.mrb[0].mxu0
    %v585 = vadd.f32 0.0, %v584
    %v586 = vpop.f32.mrb[0].mxu0
    %587 = vmatprep.mubr.bf16.mxu0 %v473
    %588 = vmatmul.mubr.bf16.gmra.mrb[0].mxu0 %v472
    %v589 = vpop.f32.mrb[0].mxu0
    %v590 = vadd.f32 0.0, %v589
    %v591 = vpop.f32.mrb[0].mxu0
    %v592 = vpop.f32.mrb[0].mxu0
    %v593 = vadd.f32 0.0, %v592
    %v594 = vpop.f32.mrb[0].mxu0
    %595 = vdwg.mxu0
    %596 = vmatprep.subr.bf16.mxu0 0
    %597 = vmatpush1.bf16.msra.mxu0 %v331
    %598 = vmatprep.subr.bf16.mxu0 0
    %599 = vmatpush1.bf16.msra.mxu0 %v332
    %600 = vmatprep.subr.bf16.mxu0 0
    %601 = vmatpush1.bf16.msra.mxu0 %v333
    %602 = vmatprep.subr.bf16.mxu0 0
    %603 = vmatpush1.bf16.msra.mxu0 %v334
    %604 = vmatprep.subr.bf16.mxu0 0
    %605 = vmatpush1.bf16.msra.mxu0 %v335
    %606 = vmatprep.subr.bf16.mxu0 0
    %607 = vmatpush1.bf16.msra.mxu0 %v336
    %608 = vmatprep.subr.bf16.mxu0 0
    %609 = vmatpush1.bf16.msra.mxu0 %v337
    %610 = vmatprep.subr.bf16.mxu0 0
    %611 = vmatpush1.bf16.msra.mxu0 %v338
    %612 = vmatprep.subr.bf16.mxu0 0
    %613 = vmatpush1.bf16.msra.mxu0 0
    %614 = vmatprep.subr.bf16.mxu0 0
    %615 = vmatpush1.bf16.msra.mxu0 0
    %616 = vmatprep.subr.bf16.mxu0 0
    %617 = vmatpush1.bf16.msra.mxu0 0
    %618 = vmatprep.subr.bf16.mxu0 0
    %619 = vmatpush1.bf16.msra.mxu0 0
    %620 = vmatprep.subr.bf16.mxu0 0
    %621 = vmatpush1.bf16.msra.mxu0 0
    %622 = vmatprep.subr.bf16.mxu0 0
    %623 = vmatpush1.bf16.msra.mxu0 0
    %624 = vmatprep.subr.bf16.mxu0 0
    %625 = vmatpush1.bf16.msra.mxu0 0
    %626 = vmatprep.subr.bf16.mxu0 0
    %627 = vmatpush1.bf16.msra.mxu0 0
    %628 = vmatprep.mubr.bf16.mxu0 0
    %629 = vmatmul.mubr.bf16.gmra.mrb[0].mxu0 %v453
    %v630 = vpop.f32.mrb[0].mxu0
    %v631 = vadd.f32 %v534, %v630
    %v632 = vpop.f32.mrb[0].mxu0
    %v633 = vpop.f32.mrb[0].mxu0
    %v634 = vadd.f32 %v537, %v633
    %v635 = vpop.f32.mrb[0].mxu0
    %636 = vmatprep.mubr.bf16.mxu0 0
    %637 = vmatmul.mubr.bf16.gmra.mrb[0].mxu0 %v456
    %v638 = vpop.f32.mrb[0].mxu0
    %v639 = vadd.f32 %v542, %v638
    %v640 = vpop.f32.mrb[0].mxu0
    %v641 = vpop.f32.mrb[0].mxu0
    %v642 = vadd.f32 %v545, %v641
    %v643 = vpop.f32.mrb[0].mxu0
    %644 = vmatprep.mubr.bf16.mxu0 0
    %645 = vmatmul.mubr.bf16.gmra.mrb[0].mxu0 %v459
    %v646 = vpop.f32.mrb[0].mxu0
    %v647 = vadd.f32 %v550, %v646
    %v648 = vpop.f32.mrb[0].mxu0
    %v649 = vpop.f32.mrb[0].mxu0
    %v650 = vadd.f32 %v553, %v649
    %v651 = vpop.f32.mrb[0].mxu0
    %652 = vmatprep.mubr.bf16.mxu0 0
    %653 = vmatmul.mubr.bf16.gmra.mrb[0].mxu0 %v462
    %v654 = vpop.f32.mrb[0].mxu0
    %v655 = vadd.f32 %v558, %v654
    %v656 = vpop.f32.mrb[0].mxu0
    %v657 = vpop.f32.mrb[0].mxu0
    %v658 = vadd.f32 %v561, %v657
    %v659 = vpop.f32.mrb[0].mxu0
    %660 = vmatprep.mubr.bf16.mxu0 0
    %661 = vmatmul.mubr.bf16.gmra.mrb[0].mxu0 %v465
    %v662 = vpop.f32.mrb[0].mxu0
    %v663 = vadd.f32 %v566, %v662
    %v664 = vpop.f32.mrb[0].mxu0
    %v665 = vpop.f32.mrb[0].mxu0
    %v666 = vadd.f32 %v569, %v665
    %v667 = vpop.f32.mrb[0].mxu0
    %668 = vmatprep.mubr.bf16.mxu0 0
    %669 = vmatmul.mubr.bf16.gmra.mrb[0].mxu0 %v468
    %v670 = vpop.f32.mrb[0].mxu0
    %v671 = vadd.f32 %v574, %v670
    %v672 = vpop.f32.mrb[0].mxu0
    %v673 = vpop.f32.mrb[0].mxu0
    %v674 = vadd.f32 %v577, %v673
    %v675 = vpop.f32.mrb[0].mxu0
    %676 = vmatprep.mubr.bf16.mxu0 0
    %677 = vmatmul.mubr.bf16.gmra.mrb[0].mxu0 %v471
    %v678 = vpop.f32.mrb[0].mxu0
    %v679 = vadd.f32 %v582, %v678
    %v680 = vpop.f32.mrb[0].mxu0
    %v681 = vpop.f32.mrb[0].mxu0
    %v682 = vadd.f32 %v585, %v681
    %v683 = vpop.f32.mrb[0].mxu0
    %684 = vmatprep.mubr.bf16.mxu0 0
    %685 = vmatmul.mubr.bf16.gmra.mrb[0].mxu0 %v474
    %v686 = vpop.f32.mrb[0].mxu0
    %v687 = vadd.f32 %v590, %v686
    %v688 = vpop.f32.mrb[0].mxu0
    %v689 = vpop.f32.mrb[0].mxu0
    %v690 = vadd.f32 %v593, %v689
    %v691 = vpop.f32.mrb[0].mxu0
    %692 = vdwg.mxu0
    %v693 = vpack.c.bf16 %v634, %v631
    %v694 = vpack.c.bf16 %v642, %v639
    %v695 = vpack.c.bf16 %v650, %v647
    %v696 = vpack.c.bf16 %v658, %v655
    %v697 = vpack.c.bf16 %v666, %v663
    %v698 = vpack.c.bf16 %v674, %v671
    %v699 = vpack.c.bf16 %v682, %v679
    %v700 = vpack.c.bf16 %v690, %v687
    %v701 = vld [vmem:[#allocation3] sm:$0xf]
    %v702 = vld [vmem:[#allocation3 + $0x4] sm:$0xf]
    %v703 = vld [vmem:[#allocation3 + $0x8] sm:$0xf]
    %v704 = vld [vmem:[#allocation3 + $0xc] sm:$0xf]
    %v705 = vld [vmem:[#allocation3 + $0x10] sm:$0xf]
    %v706 = vld [vmem:[#allocation3 + $0x14] sm:$0xf]
    %v707 = vld [vmem:[#allocation3 + $0x18] sm:$0xf]
    %v708 = vld [vmem:[#allocation3 + $0x1c] sm:$0xf]
    %v709 = vld [vmem:[#allocation3 + $0x20] sm:$0xf]
    %v710 = vld [vmem:[#allocation3 + $0x24] sm:$0xf]
    %v711 = vld [vmem:[#allocation3 + $0x28] sm:$0xf]
    %v712 = vld [vmem:[#allocation3 + $0x2c] sm:$0xf]
    %v713 = vld [vmem:[#allocation3 + $0x30] sm:$0xf]
    %v714 = vld [vmem:[#allocation3 + $0x34] sm:$0xf]
    %v715 = vld [vmem:[#allocation3 + $0x38] sm:$0xf]
    %v716 = vld [vmem:[#allocation3 + $0x3c] sm:$0xf]
    %v717 = vld [vmem:[%s4] sm:$0xff]
    %v718 = vld [vmem:[%s4 + $0x8] sm:$0xff]
    %v719 = vld [vmem:[%s4 + $0x10] sm:$0xff]
    %v720 = vld [vmem:[%s4 + $0x18] sm:$0xff]
    %v721 = vld [vmem:[%s4 + $0x20] sm:$0xff]
    %v722 = vld [vmem:[%s4 + $0x28] sm:$0xff]
    %v723 = vld [vmem:[%s4 + $0x30] sm:$0xff]
    %v724 = vld [vmem:[%s4 + $0x38] sm:$0xff]
    %v725 = vld [vmem:[%s4 + $0x40] sm:$0xff]
    %v726 = vld [vmem:[%s4 + $0x48] sm:$0xff]
    %v727 = vld [vmem:[%s4 + $0x50] sm:$0xff]
    %v728 = vld [vmem:[%s4 + $0x58] sm:$0xff]
    %v729 = vld [vmem:[%s4 + $0x60] sm:$0xff]
    %v730 = vld [vmem:[%s4 + $0x68] sm:$0xff]
    %v731 = vld [vmem:[%s4 + $0x70] sm:$0xff]
    %v732 = vld [vmem:[%s4 + $0x78] sm:$0xff]
    %734 = vset.pattern.permute.xlu0 0
    %735 = vperm.xlu0 %734, %v717
    %v736 = vpop.permute.xlu0 %735
    %739 = vset.pattern.permute.xlu0 0
    %740 = vperm.xlu0 %739, %v718
    %v741 = vpop.permute.xlu0 %740
    %744 = vset.pattern.permute.xlu0 0
    %745 = vperm.xlu0 %744, %v719
    %v746 = vpop.permute.xlu0 %745
    %749 = vset.pattern.permute.xlu0 0
    %750 = vperm.xlu0 %749, %v720
    %v751 = vpop.permute.xlu0 %750
    %754 = vset.pattern.permute.xlu0 0
    %755 = vperm.xlu0 %754, %v721
    %v756 = vpop.permute.xlu0 %755
    %759 = vset.pattern.permute.xlu0 0
    %760 = vperm.xlu0 %759, %v722
    %v761 = vpop.permute.xlu0 %760
    %764 = vset.pattern.permute.xlu0 0
    %765 = vperm.xlu0 %764, %v723
    %v766 = vpop.permute.xlu0 %765
    %769 = vset.pattern.permute.xlu0 0
    %770 = vperm.xlu0 %769, %v724
    %v771 = vpop.permute.xlu0 %770
    %774 = vset.pattern.permute.xlu0 0
    %775 = vperm.xlu0 %774, %v725
    %v776 = vpop.permute.xlu0 %775
    %779 = vset.pattern.permute.xlu0 0
    %780 = vperm.xlu0 %779, %v726
    %v781 = vpop.permute.xlu0 %780
    %784 = vset.pattern.permute.xlu0 0
    %785 = vperm.xlu0 %784, %v727
    %v786 = vpop.permute.xlu0 %785
    %789 = vset.pattern.permute.xlu0 0
    %790 = vperm.xlu0 %789, %v728
    %v791 = vpop.permute.xlu0 %790
    %794 = vset.pattern.permute.xlu0 0
    %795 = vperm.xlu0 %794, %v729
    %v796 = vpop.permute.xlu0 %795
    %799 = vset.pattern.permute.xlu0 0
    %800 = vperm.xlu0 %799, %v730
    %v801 = vpop.permute.xlu0 %800
    %804 = vset.pattern.permute.xlu0 0
    %805 = vperm.xlu0 %804, %v731
    %v806 = vpop.permute.xlu0 %805
    %809 = vset.pattern.permute.xlu0 0
    %810 = vperm.xlu0 %809, %v732
    %v811 = vpop.permute.xlu0 %810
    %v829 = vunpack.c.l.b16 %v701
    %v830 = vunpack.c.l.b16 %v702
    %v831 = vunpack.c.l.b16 %v703
    %v832 = vunpack.c.l.b16 %v704
    %v833 = vunpack.c.l.b16 %v705
    %v834 = vunpack.c.l.b16 %v706
    %v835 = vunpack.c.l.b16 %v707
    %v836 = vunpack.c.l.b16 %v708
    %v837 = vunpack.c.l.b16 %v709
    %v838 = vunpack.c.l.b16 %v710
    %v839 = vunpack.c.l.b16 %v711
    %v840 = vunpack.c.l.b16 %v712
    %v841 = vunpack.c.l.b16 %v713
    %v842 = vunpack.c.l.b16 %v714
    %v843 = vunpack.c.l.b16 %v715
    %v844 = vunpack.c.l.b16 %v716
    %v845 = vpack.c.b16 %v830, %v829
    %v846 = vpack.c.b16 %v832, %v831
    %v847 = vpack.c.b16 %v834, %v833
    %v848 = vpack.c.b16 %v836, %v835
    %v849 = vpack.c.b16 %v838, %v837
    %v850 = vpack.c.b16 %v840, %v839
    %v851 = vpack.c.b16 %v842, %v841
    %v852 = vpack.c.b16 %v844, %v843
    %861 = vmatprep.subr.bf16.mxu0 0
    %862 = vmatpush1.bf16.msra.mxu0 %v693
    %863 = vmatprep.subr.bf16.mxu0 0
    %864 = vmatpush1.bf16.msra.mxu0 %v694
    %865 = vmatprep.subr.bf16.mxu0 0
    %866 = vmatpush1.bf16.msra.mxu0 %v695
    %867 = vmatprep.subr.bf16.mxu0 0
    %868 = vmatpush1.bf16.msra.mxu0 %v696
    %869 = vmatprep.subr.bf16.mxu0 0
    %870 = vmatpush1.bf16.msra.mxu0 %v697
    %871 = vmatprep.subr.bf16.mxu0 0
    %872 = vmatpush1.bf16.msra.mxu0 %v698
    %873 = vmatprep.subr.bf16.mxu0 0
    %874 = vmatpush1.bf16.msra.mxu0 %v699
    %875 = vmatprep.subr.bf16.mxu0 0
    %876 = vmatpush1.bf16.msra.mxu0 %v700
    %877 = vmatprep.subr.bf16.mxu0 0
    %878 = vmatpush1.bf16.msra.mxu0 0
    %879 = vmatprep.subr.bf16.mxu0 0
    %880 = vmatpush1.bf16.msra.mxu0 0
    %881 = vmatprep.subr.bf16.mxu0 0
    %882 = vmatpush1.bf16.msra.mxu0 0
    %883 = vmatprep.subr.bf16.mxu0 0
    %884 = vmatpush1.bf16.msra.mxu0 0
    %885 = vmatprep.subr.bf16.mxu0 0
    %886 = vmatpush1.bf16.msra.mxu0 0
    %887 = vmatprep.subr.bf16.mxu0 0
    %888 = vmatpush1.bf16.msra.mxu0 0
    %889 = vmatprep.subr.bf16.mxu0 0
    %890 = vmatpush1.bf16.msra.mxu0 0
    %891 = vmatprep.subr.bf16.mxu0 0
    %892 = vmatpush1.bf16.msra.mxu0 0
    %893 = vmatprep.mubr.bf16.mxu0 0
    %894 = vmatmul.mubr.bf16.gmra.mrb[0].mxu0 %v845
    %v895 = vpop.f32.mrb[0].mxu0
    %v896 = vadd.f32 %v736, %v895
    %v897 = vpop.f32.mrb[0].mxu0
    %v898 = vpop.f32.mrb[0].mxu0
    %v899 = vadd.f32 %v741, %v898
    %v900 = vpop.f32.mrb[0].mxu0
    %901 = vmatprep.mubr.bf16.mxu0 0
    %902 = vmatmul.mubr.bf16.gmra.mrb[0].mxu0 %v846
    %v903 = vpop.f32.mrb[0].mxu0
    %v904 = vadd.f32 %v746, %v903
    %v905 = vpop.f32.mrb[0].mxu0
    %v906 = vpop.f32.mrb[0].mxu0
    %v907 = vadd.f32 %v751, %v906
    %v908 = vpop.f32.mrb[0].mxu0
    %909 = vmatprep.mubr.bf16.mxu0 0
    %910 = vmatmul.mubr.bf16.gmra.mrb[0].mxu0 %v847
    %v911 = vpop.f32.mrb[0].mxu0
    %v912 = vadd.f32 %v756, %v911
    %v913 = vpop.f32.mrb[0].mxu0
    %v914 = vpop.f32.mrb[0].mxu0
    %v915 = vadd.f32 %v761, %v914
    %v916 = vpop.f32.mrb[0].mxu0
    %917 = vmatprep.mubr.bf16.mxu0 0
    %918 = vmatmul.mubr.bf16.gmra.mrb[0].mxu0 %v848
    %v919 = vpop.f32.mrb[0].mxu0
    %v920 = vadd.f32 %v766, %v919
    %v921 = vpop.f32.mrb[0].mxu0
    %v922 = vpop.f32.mrb[0].mxu0
    %v923 = vadd.f32 %v771, %v922
    %v924 = vpop.f32.mrb[0].mxu0
    %925 = vmatprep.mubr.bf16.mxu0 0
    %926 = vmatmul.mubr.bf16.gmra.mrb[0].mxu0 %v849
    %v927 = vpop.f32.mrb[0].mxu0
    %v928 = vadd.f32 %v776, %v927
    %v929 = vpop.f32.mrb[0].mxu0
    %v930 = vpop.f32.mrb[0].mxu0
    %v931 = vadd.f32 %v781, %v930
    %v932 = vpop.f32.mrb[0].mxu0
    %933 = vmatprep.mubr.bf16.mxu0 0
    %934 = vmatmul.mubr.bf16.gmra.mrb[0].mxu0 %v850
    %v935 = vpop.f32.mrb[0].mxu0
    %v936 = vadd.f32 %v786, %v935
    %v937 = vpop.f32.mrb[0].mxu0
    %v938 = vpop.f32.mrb[0].mxu0
    %v939 = vadd.f32 %v791, %v938
    %v940 = vpop.f32.mrb[0].mxu0
    %941 = vmatprep.mubr.bf16.mxu0 0
    %942 = vmatmul.mubr.bf16.gmra.mrb[0].mxu0 %v851
    %v943 = vpop.f32.mrb[0].mxu0
    %v944 = vadd.f32 %v796, %v943
    %v945 = vpop.f32.mrb[0].mxu0
    %v946 = vpop.f32.mrb[0].mxu0
    %v947 = vadd.f32 %v801, %v946
    %v948 = vpop.f32.mrb[0].mxu0
    %949 = vmatprep.mubr.bf16.mxu0 0
    %950 = vmatmul.mubr.bf16.gmra.mrb[0].mxu0 %v852
    %v951 = vpop.f32.mrb[0].mxu0
    %v952 = vadd.f32 %v806, %v951
    %v953 = vpop.f32.mrb[0].mxu0
    %v954 = vpop.f32.mrb[0].mxu0
    %v955 = vadd.f32 %v811, %v954
    %v956 = vpop.f32.mrb[0].mxu0
    %957 = vdwg.mxu0
    %v958 = vmax.f32 %v896, 0.0
    %v959 = vmax.f32 %v899, 0.0
    %v960 = vmax.f32 %v904, 0.0
    %v961 = vmax.f32 %v907, 0.0
    %v962 = vmax.f32 %v912, 0.0
    %v963 = vmax.f32 %v915, 0.0
    %v964 = vmax.f32 %v920, 0.0
    %v965 = vmax.f32 %v923, 0.0
    %v966 = vmax.f32 %v928, 0.0
    %v967 = vmax.f32 %v931, 0.0
    %v968 = vmax.f32 %v936, 0.0
    %v969 = vmax.f32 %v939, 0.0
    %v970 = vmax.f32 %v944, 0.0
    %v971 = vmax.f32 %v947, 0.0
    %v972 = vmax.f32 %v952, 0.0
    %v973 = vmax.f32 %v955, 0.0
    %v974 = vld [vmem:[#allocation6] sm:$0xf]
    %v975 = vld [vmem:[#allocation6 + $0x4] sm:$0xf]
    %v976 = vld [vmem:[#allocation6 + $0x8] sm:$0xf]
    %v977 = vld [vmem:[#allocation6 + $0xc] sm:$0xf]
    %v978 = vld [vmem:[#allocation6 + $0x10] sm:$0xf]
    %v979 = vld [vmem:[#allocation6 + $0x14] sm:$0xf]
    %v980 = vld [vmem:[#allocation6 + $0x18] sm:$0xf]
    %v981 = vld [vmem:[#allocation6 + $0x1c] sm:$0xf]
    %v982 = vpack.c.bf16 %v959, %v958
    %v983 = vpack.c.bf16 %v961, %v960
    %v984 = vpack.c.bf16 %v963, %v962
    %v985 = vpack.c.bf16 %v965, %v964
    %v986 = vpack.c.bf16 %v967, %v966
    %v987 = vpack.c.bf16 %v969, %v968
    %v988 = vpack.c.bf16 %v971, %v970
    %v989 = vpack.c.bf16 %v973, %v972
    %v990 = vld [vmem:[%s6] sm:$0xff]
    %v991 = vld [vmem:[%s6 + $0x8] sm:$0xff]
    %v992 = vld [vmem:[%s6 + $0x10] sm:$0xff]
    %v993 = vld [vmem:[%s6 + $0x18] sm:$0xff]
    %v994 = vld [vmem:[%s6 + $0x20] sm:$0xff]
    %v995 = vld [vmem:[%s6 + $0x28] sm:$0xff]
    %v996 = vld [vmem:[%s6 + $0x30] sm:$0xff]
    %v997 = vld [vmem:[%s6 + $0x38] sm:$0xff]
    %999 = vset.pattern.permute.xlu0 0
    %1000 = vperm.xlu0 %999, %v990
    %v1001 = vpop.permute.xlu0 %1000
    %1004 = vset.pattern.permute.xlu0 0
    %1005 = vperm.xlu0 %1004, %v991
    %v1006 = vpop.permute.xlu0 %1005
    %1009 = vset.pattern.permute.xlu0 0
    %1010 = vperm.xlu0 %1009, %v992
    %v1011 = vpop.permute.xlu0 %1010
    %1014 = vset.pattern.permute.xlu0 0
    %1015 = vperm.xlu0 %1014, %v993
    %v1016 = vpop.permute.xlu0 %1015
    %1019 = vset.pattern.permute.xlu0 0
    %1020 = vperm.xlu0 %1019, %v994
    %v1021 = vpop.permute.xlu0 %1020
    %1024 = vset.pattern.permute.xlu0 0
    %1025 = vperm.xlu0 %1024, %v995
    %v1026 = vpop.permute.xlu0 %1025
    %1029 = vset.pattern.permute.xlu0 0
    %1030 = vperm.xlu0 %1029, %v996
    %v1031 = vpop.permute.xlu0 %1030
    %1034 = vset.pattern.permute.xlu0 0
    %1035 = vperm.xlu0 %1034, %v997
    %v1036 = vpop.permute.xlu0 %1035
    %v1046 = vunpack.c.l.b16 %v974
    %v1047 = vunpack.c.l.b16 %v975
    %v1048 = vunpack.c.l.b16 %v976
    %v1049 = vunpack.c.l.b16 %v977
    %v1050 = vunpack.c.l.b16 %v978
    %v1051 = vunpack.c.l.b16 %v979
    %v1052 = vunpack.c.l.b16 %v980
    %v1053 = vunpack.c.l.b16 %v981
    %v1054 = vpack.c.b16 %v1047, %v1046
    %v1055 = vpack.c.b16 %v1049, %v1048
    %v1056 = vpack.c.b16 %v1051, %v1050
    %v1057 = vpack.c.b16 %v1053, %v1052
    %1062 = vmatprep.subr.bf16.mxu0 0
    %1063 = vmatpush1.bf16.msra.mxu0 %v982
    %1064 = vmatprep.subr.bf16.mxu0 0
    %1065 = vmatpush1.bf16.msra.mxu0 %v983
    %1066 = vmatprep.subr.bf16.mxu0 0
    %1067 = vmatpush1.bf16.msra.mxu0 %v984
    %1068 = vmatprep.subr.bf16.mxu0 0
    %1069 = vmatpush1.bf16.msra.mxu0 %v985
    %1070 = vmatprep.subr.bf16.mxu0 0
    %1071 = vmatpush1.bf16.msra.mxu0 %v986
    %1072 = vmatprep.subr.bf16.mxu0 0
    %1073 = vmatpush1.bf16.msra.mxu0 %v987
    %1074 = vmatprep.subr.bf16.mxu0 0
    %1075 = vmatpush1.bf16.msra.mxu0 %v988
    %1076 = vmatprep.subr.bf16.mxu0 0
    %1077 = vmatpush1.bf16.msra.mxu0 %v989
    %1078 = vmatprep.subr.bf16.mxu0 0
    %1079 = vmatpush1.bf16.msra.mxu0 0
    %1080 = vmatprep.subr.bf16.mxu0 0
    %1081 = vmatpush1.bf16.msra.mxu0 0
    %1082 = vmatprep.subr.bf16.mxu0 0
    %1083 = vmatpush1.bf16.msra.mxu0 0
    %1084 = vmatprep.subr.bf16.mxu0 0
    %1085 = vmatpush1.bf16.msra.mxu0 0
    %1086 = vmatprep.subr.bf16.mxu0 0
    %1087 = vmatpush1.bf16.msra.mxu0 0
    %1088 = vmatprep.subr.bf16.mxu0 0
    %1089 = vmatpush1.bf16.msra.mxu0 0
    %1090 = vmatprep.subr.bf16.mxu0 0
    %1091 = vmatpush1.bf16.msra.mxu0 0
    %1092 = vmatprep.subr.bf16.mxu0 0
    %1093 = vmatpush1.bf16.msra.mxu0 0
    %1094 = vmatprep.mubr.bf16.mxu0 0
    %1095 = vmatmul.mubr.bf16.gmra.mrb[0].mxu0 %v1054
    %v1096 = vpop.f32.mrb[0].mxu0
    %v1097 = vadd.f32 %v1001, %v1096
    %v1098 = vpop.f32.mrb[0].mxu0
    %v1099 = vpop.f32.mrb[0].mxu0
    %v1100 = vadd.f32 %v1006, %v1099
    %v1101 = vpop.f32.mrb[0].mxu0
    %1102 = vmatprep.mubr.bf16.mxu0 0
    %1103 = vmatmul.mubr.bf16.gmra.mrb[0].mxu0 %v1055
    %v1104 = vpop.f32.mrb[0].mxu0
    %v1105 = vadd.f32 %v1011, %v1104
    %v1106 = vpop.f32.mrb[0].mxu0
    %v1107 = vpop.f32.mrb[0].mxu0
    %v1108 = vadd.f32 %v1016, %v1107
    %v1109 = vpop.f32.mrb[0].mxu0
    %1110 = vmatprep.mubr.bf16.mxu0 0
    %1111 = vmatmul.mubr.bf16.gmra.mrb[0].mxu0 %v1056
    %v1112 = vpop.f32.mrb[0].mxu0
    %v1113 = vadd.f32 %v1021, %v1112
    %v1114 = vpop.f32.mrb[0].mxu0
    %v1115 = vpop.f32.mrb[0].mxu0
    %v1116 = vadd.f32 %v1026, %v1115
    %v1117 = vpop.f32.mrb[0].mxu0
    %1118 = vmatprep.mubr.bf16.mxu0 0
    %1119 = vmatmul.mubr.bf16.gmra.mrb[0].mxu0 %v1057
    %v1120 = vpop.f32.mrb[0].mxu0
    %v1121 = vadd.f32 %v1031, %v1120
    %v1122 = vpop.f32.mrb[0].mxu0
    %v1123 = vpop.f32.mrb[0].mxu0
    %v1124 = vadd.f32 %v1036, %v1123
    %v1125 = vpop.f32.mrb[0].mxu0
    %1126 = vdwg.mxu0
    %v1127 = vmax.f32 %v1097, 0.0
    %v1128 = vmax.f32 %v1100, 0.0
    %v1129 = vmax.f32 %v1105, 0.0
    %v1130 = vmax.f32 %v1108, 0.0
    %v1131 = vmax.f32 %v1113, 0.0
    %v1132 = vmax.f32 %v1116, 0.0
    %v1133 = vmax.f32 %v1121, 0.0
    %v1134 = vmax.f32 %v1124, 0.0
    %v1135 = vld [vmem:[%s7] sm:$0x1]
    %v1136 = vpack.c.bf16 %v1128, %v1127
    %v1137 = vpack.c.bf16 %v1130, %v1129
    %v1138 = vpack.c.bf16 %v1132, %v1131
    %v1139 = vpack.c.bf16 %v1134, %v1133
    %s1140 = sld [smem:[#allocation2]]
    %v1141 = vstv %s1140
    %vm1142 = vcmask 523264
    %v1144 = vsel %vm1142, %v1135, 0
    %1146 = vmatprep.subr.bf16.mxu0 0
    %1147 = vmatpush1.bf16.msra.mxu0 %v1136
    %1148 = vmatprep.subr.bf16.mxu0 0
    %1149 = vmatpush1.bf16.msra.mxu0 %v1137
    %1150 = vmatprep.subr.bf16.mxu0 0
    %1151 = vmatpush1.bf16.msra.mxu0 %v1138
    %1152 = vmatprep.subr.bf16.mxu0 0
    %1153 = vmatpush1.bf16.msra.mxu0 %v1139
    %1154 = vmatprep.subr.bf16.mxu0 0
    %1155 = vmatpush1.bf16.msra.mxu0 0
    %1156 = vmatprep.subr.bf16.mxu0 0
    %1157 = vmatpush1.bf16.msra.mxu0 0
    %1158 = vmatprep.subr.bf16.mxu0 0
    %1159 = vmatpush1.bf16.msra.mxu0 0
    %1160 = vmatprep.subr.bf16.mxu0 0
    %1161 = vmatpush1.bf16.msra.mxu0 0
    %1162 = vmatprep.subr.bf16.mxu0 0
    %1163 = vmatpush1.bf16.msra.mxu0 0
    %1164 = vmatprep.subr.bf16.mxu0 0
    %1165 = vmatpush1.bf16.msra.mxu0 0
    %1166 = vmatprep.subr.bf16.mxu0 0
    %1167 = vmatpush1.bf16.msra.mxu0 0
    %1168 = vmatprep.subr.bf16.mxu0 0
    %1169 = vmatpush1.bf16.msra.mxu0 0
    %1170 = vmatprep.subr.bf16.mxu0 0
    %1171 = vmatpush1.bf16.msra.mxu0 0
    %1172 = vmatprep.subr.bf16.mxu0 0
    %1173 = vmatpush1.bf16.msra.mxu0 0
    %1174 = vmatprep.subr.bf16.mxu0 0
    %1175 = vmatpush1.bf16.msra.mxu0 0
    %1176 = vmatprep.subr.bf16.mxu0 0
    %1177 = vmatpush1.bf16.msra.mxu0 0
    %1178 = vmatprep.mubr.bf16.mxu0 0
    %1179 = vmatmul.mubr.bf16.gmra.mrb[0].mxu0 %v1144
    %v1180 = vpop.f32.mrb[0].mxu0
    %v1181 = vadd.f32 %v1141, %v1180
    %v1182 = vpop.f32.mrb[0].mxu0
    %v1183 = vpop.f32.mrb[0].mxu0
    %v1184 = vpop.f32.mrb[0].mxu0
    %1185 = vdwg.mxu0
    %1186 = vst [vmem:[#allocation8] sm:$0x1] %v1181
    // Predicated region
    $region46: #{tpu_custom_call.1} parent=1 // pred_check
      _
    $region47: #{tpu_custom_call.1} parent=1 // pred_check_branch
      %1188 = sbr.rel (0) target = $region49
    $region48: #{tpu_custom_call.1} parent=1 // pred_region
      %s1190 = ssub.s32 16, 16
      %1191 = vsyncadd [#allocation5], %s1190
      %s1193 = sshll.u32 [#allocation8], 4
      %s1194 = int_to_ptr.vmem [resolvable:$true] %s1193
      %1196 = dma.vmem_to_hbm [thread:$0]  %s1194, 16, %s9, [#allocation5]
    $region49: #{tpu_custom_call.1} parent=1 // pred_fallthru
      _
    // Predicated region
    $region50: #{tpu_custom_call.1} parent=1 // pred_check
      _
    $region51: #{tpu_custom_call.1} parent=1 // pred_check_branch
      %1198 = sbr.rel (0) target = $region53
    $region52: #{tpu_custom_call.1} parent=1 // pred_region
      %1199 = dma.done [#allocation5], 16
    $region53: #{tpu_custom_call.1} parent=1 // pred_fallthru
      _
    %1200 = vsyncpa [#allocation4], 1
    %1201 = vsyncpa [#allocation7], 1
    %1202 = vsyncpa [#allocation5], 1

</llo_original>
